<compile_context>
chip_gen: v5e
topology: v5e:2x2
jax: 0.10.0
libtpu: 0.0.40
codegen_flags: <defaults>
</compile_context>

<pallas_src>
import functools
import math

import jax
import jax.numpy as jnp
from jax.experimental import pallas as pl
from jax.experimental.pallas import tpu as pltpu


def _nsb_kernel(p_ref, q_ref, eps_ref, w_in_ref, w_out_ref, out_ref, kl_ref,
                *, L, c_in, cv):
    """One lane-tile of the fused forward pass.

    p_ref    : (c_in, TN)        p_params, lane-major (channels x batch*length)
    q_ref    : (c_in, TN)        q_params
    eps_ref  : (cv, TN)          rsample noise
    w_in_ref : (4*cv, 6*c_in+1)  block-diag [conv_in_p ; conv_in_q], taps unrolled
                                 on K, bias folded in as the last K column
    w_out_ref: (c_out, 3*cv+1)   conv_out, taps unrolled on K, bias folded in
    out_ref  : (c_out, TN)
    kl_ref   : (cv, TN)

    TN is a whole number of length-L batch segments, so replicate padding of every
    segment reduces to a one-lane shift plus a fixup at each segment edge.
    """
    TN = p_ref.shape[-1]
    f32 = jnp.float32

    # Per-segment edge masks, computed once at row-width 1 and broadcast.
    pos = jax.lax.broadcasted_iota(jnp.int32, (1, TN), 1) % L
    left_edge = pos == 0
    right_edge = pos == (L - 1)

    def shifted_taps(x):
        # x_m1[:, c] = x[:, c-1], x_p1[:, c] = x[:, c+1], replicate at the edges of
        # every length-L segment.  Lane shifts as slice+concat (safe in both Mosaic
        # and interpret modes); the edge fixup also covers the block boundary lanes.
        x_m1 = jnp.concatenate([x[:, :1], x[:, :TN - 1]], axis=1)
        x_p1 = jnp.concatenate([x[:, 1:], x[:, TN - 1:]], axis=1)
        x_m1 = jnp.where(left_edge, x, x_m1)
        x_p1 = jnp.where(right_edge, x, x_p1)
        return x_m1, x_p1

    def softplus(x):
        # numerically stable, matches torch.nn.functional.softplus
        return jnp.maximum(x, 0.0) + jnp.log(1.0 + jnp.exp(-jnp.abs(x)))

    # ---- conv_in_p and conv_in_q fused into ONE matmul (bias folded in) -------
    p_in = p_ref[...]
    q_in = q_ref[...]
    p_m1, p_p1 = shifted_taps(p_in)
    q_m1, q_p1 = shifted_taps(q_in)
    ones = jnp.ones((1, TN), f32)
    # Row order must match the K layout of w_in:
    #   [p tap0 | p tap1 | p tap2 | q tap0 | q tap1 | q tap2 | bias]
    stacked_in = jnp.concatenate(
        [p_m1, p_in, p_p1, q_m1, q_in, q_p1, ones], axis=0)          # (6*c_in+1, TN)
    par = jnp.dot(w_in_ref[...], stacked_in,
                  preferred_element_type=f32)                        # (4*cv, TN)

    # NOTE: these row splits stay sublane-tile aligned when cv % 8 == 0 (f32).
    p_mu, p_lstd = par[:cv], par[cv:2 * cv]
    q_mu, q_lstd = par[2 * cv:3 * cv], par[3 * cv:]
    p_std = softplus(p_lstd)
    q_std = softplus(q_lstd)

    # ---- z ~ q (rsample) -------------------------------------------------------
    z = q_mu + q_std * eps_ref[...]                                  # (cv, TN)

    # ---- conv_out as ONE matmul (bias folded in) -------------------------------
    z_m1, z_p1 = shifted_taps(z)
    stacked_z = jnp.concatenate([z_m1, z, z_p1, ones], axis=0)       # (3*cv+1, TN)
    out_ref[...] = jnp.dot(w_out_ref[...], stacked_z,
                           preferred_element_type=f32).astype(out_ref.dtype)

    # ---- KL( N(q_mu, q_std) || N(p_mu, p_std) ), elementwise -------------------
    # One shared exact reciprocal (keeps the 1e-4 tolerance); with a looser
    # tolerance, pl.reciprocal(p_std, approx=True) moves this to the EUP slot.
    inv_p_std = 1.0 / p_std
    ratio = q_std * inv_p_std
    var_ratio = ratio * ratio
    t1 = (q_mu - p_mu) * inv_p_std
    kl_ref[...] = (0.5 * (var_ratio + t1 * t1 - 1.0 - jnp.log(var_ratio))
                   ).astype(kl_ref.dtype)


def _pick_block_batches(B, L, c_in, cv, c_out):
    """Batches per grid step.

    Targets lane blocks of ~512-2048 lanes (whole length-L batch segments, a
    multiple of 128 when tiled) with >= 4 grid steps so the BlockSpec pipeline
    overlaps DMA with compute and the "parallel" axis can shard across v7x's two
    TensorCores.  A ~8 MiB per-step cap keeps the footprint well under v7x's
    64 MiB physical / 32 MiB default-scoped VMEM.  Tiny problems fall back to a
    single full-extent block.
    """
    N = B * L
    # Rough per-lane f32 footprint: double-buffered gridded I/O tiles plus the
    # in-kernel stacked/intermediate temporaries.
    rows_io = 2 * c_in + 2 * cv + c_out
    rows_tmp = (6 * c_in + 1) + (3 * cv + 1) + 4 * cv + 6 * cv + c_out
    bytes_per_lane = rows_io * 4 * 2 + rows_tmp * 4
    max_tn = max(128, (8 << 20) // bytes_per_lane)

    cands = [bt for bt in range(1, B)
             if B % bt == 0 and (bt * L) % 128 == 0 and bt * L <= max_tn]
    if not cands:
        # Tiny problem (or a single unsplittable segment): one full-extent block.
        return B

    def score(bt):
        tn = bt * L
        steps = N // tn
        return (512 <= tn <= 2048 and steps >= 4,   # sweet spot: pipelined + amortized
                512 <= tn <= 2048,
                steps >= 2,                          # >=2 steps -> v7x megacore shards
                tn)

    return max(cands, key=score)


def normal_stochastic_block_1d(p_params, q_params, eps, wp, bp, wq, bq, wo, bo):
    """p_params/q_params: (B, c_in, L); eps: (B, c_vars, L).
    wp/wq: (2*c_vars, c_in, 3), wo: (c_out, c_vars, 3); biases 1-D.
    Returns (out (B, c_out, L), kl (B, c_vars, L))."""
    B, c_in, L = p_params.shape
    cv = eps.shape[1]
    c_out = wo.shape[0]
    f32 = jnp.float32

    # Pad the batch so B_pad*L is a multiple of 128: lane-dense stores and a
    # guaranteed 128-aligned block split (padded segments are sliced off at the end).
    step = 128 // math.gcd(L, 128)
    B_pad = -(-B // step) * step
    if B_pad != B:
        padb = lambda x: jnp.pad(x, ((0, B_pad - B), (0, 0), (0, 0)))
        p_params, q_params, eps = padb(p_params), padb(q_params), padb(eps)
    N = B_pad * L

    # ---- lane-dense layout glue (layout plumbing only) -------------------------
    to_lm = lambda x: jnp.transpose(x, (1, 0, 2)).reshape(x.shape[1], N).astype(f32)
    p_lm, q_lm, eps_lm = to_lm(p_params), to_lm(q_params), to_lm(eps)

    # Tap-unrolled weights: each conv becomes one (C_out, 3*C_in+1) x (3*C_in+1, N)
    # dot (bias folded in as the last K column); conv_in_p / conv_in_q are further
    # fused block-diagonally into a single dot.
    tapize = lambda w: jnp.concatenate([w[:, :, 0], w[:, :, 1], w[:, :, 2]], axis=1).astype(f32)
    wp_t, wq_t, wo_t = tapize(wp), tapize(wq), tapize(wo)
    zero = jnp.zeros_like(wp_t)
    w_in = jnp.concatenate([jnp.concatenate([wp_t, zero], axis=1),
                            jnp.concatenate([zero, wq_t], axis=1)], axis=0)      # (4cv, 6c_in)
    b_in = jnp.concatenate([bp, bq]).reshape(-1, 1).astype(f32)
    w_in = jnp.concatenate([w_in, b_in], axis=1)                                 # (4cv, 6c_in+1)
    w_out = jnp.concatenate([wo_t, bo.reshape(-1, 1).astype(f32)], axis=1)       # (c_out, 3cv+1)

    Bt = _pick_block_batches(B_pad, L, c_in, cv, c_out)
    TN = Bt * L
    n_blocks = N // TN

    lane_spec = lambda rows: pl.BlockSpec((rows, TN), lambda n: (0, n))
    full_spec = lambda shape: pl.BlockSpec(shape, lambda n: (0, 0))

    grid_spec = pltpu.PrefetchScalarGridSpec(
        num_scalar_prefetch=0,
        grid=(n_blocks,),
        in_specs=[lane_spec(c_in),                 # p_params (lane-major)
                  lane_spec(c_in),                 # q_params
                  lane_spec(cv),                   # eps
                  full_spec(w_in.shape),           # fused conv_in weights (+bias)
                  full_spec(w_out.shape)],         # conv_out weights (+bias)
        out_specs=[lane_spec(c_out),               # out
                   lane_spec(cv)],                 # kl
    )

    out_lm, kl_lm = pl.pallas_call(
        functools.partial(_nsb_kernel, L=L, c_in=c_in, cv=cv),
        out_shape=(jax.ShapeDtypeStruct((c_out, N), f32),
                   jax.ShapeDtypeStruct((cv, N), f32)),
        grid_spec=grid_spec,
        compiler_params=pltpu.CompilerParams(
            dimension_semantics=("parallel",),
            vmem_limit_bytes=32 << 20),
    )(p_lm, q_lm, eps_lm, w_in, w_out)

    from_lm = lambda x: jnp.transpose(x.reshape(x.shape[0], B_pad, L), (1, 0, 2))[:B]
    return from_lm(out_lm), from_lm(kl_lm)


# ---------- pure-JAX reference for validation ----------
def _conv1d_replicate_ref(x, w, b):
    L = x.shape[-1]
    xp = jnp.concatenate([x[:, :, :1], x, x[:, :, -1:]], axis=-1)
    out = (jnp.einsum('oi,bil->bol', w[:, :, 0], xp[:, :, 0:L]) +
           jnp.einsum('oi,bil->bol', w[:, :, 1], xp[:, :, 1:L + 1]) +
           jnp.einsum('oi,bil->bol', w[:, :, 2], xp[:, :, 2:L + 2]))
    return out + b[None, :, None]


def _reference(p_params, q_params, eps, wp, bp, wq, bq, wo, bo, cv):
    softplus = lambda x: jnp.maximum(x, 0.0) + jnp.log1p(jnp.exp(-jnp.abs(x)))
    pp = _conv1d_replicate_ref(p_params, wp, bp)
    qq = _conv1d_replicate_ref(q_params, wq, bq)
    p_mu, p_lstd = pp[:, :cv], pp[:, cv:]
    q_mu, q_lstd = qq[:, :cv], qq[:, cv:]
    p_std, q_std = softplus(p_lstd), softplus(q_lstd)
    z = q_mu + q_std * eps
    out = _conv1d_replicate_ref(z, wo, bo)
    var_ratio = (q_std / p_std) ** 2
    t1 = ((q_mu - p_mu) / p_std) ** 2
    kl = 0.5 * (var_ratio + t1 - 1.0 - jnp.log(var_ratio))
    return out, kl


if __name__ == "__main__":
    def run_case(key, B, c_in, c_vars, c_out, L):
        k_p, k_q, k_eps, k_wp, k_bp, k_wq, k_bq, k_wo, k_bo = jax.random.split(key, 9)
        p_params = jax.random.normal(k_p, (B, c_in, L), jnp.float32)
        q_params = jax.random.normal(k_q, (B, c_in, L), jnp.float32)
        eps = jax.random.normal(k_eps, (B, c_vars, L), jnp.float32)   # rsample noise

        # deterministic Conv1d parameters (PyTorch-style uniform(-1/sqrt(fan_in), +))
        def conv_init(kw, kb, c_o, c_i, ksz):
            bound = 1.0 / (c_i * ksz) ** 0.5
            w = jax.random.uniform(kw, (c_o, c_i, ksz), jnp.float32, -bound, bound)
            b = jax.random.uniform(kb, (c_o,), jnp.float32, -bound, bound)
            return w, b

        wp, bp = conv_init(k_wp, k_bp, 2 * c_vars, c_in, 3)   # conv_in_p
        wq, bq = conv_init(k_wq, k_bq, 2 * c_vars, c_in, 3)   # conv_in_q
        wo, bo = conv_init(k_wo, k_bo, c_out, c_vars, 3)      # conv_out

        out, kl = normal_stochastic_block_1d(p_params, q_params, eps,
                                             wp, bp, wq, bq, wo, bo)
        jax.block_until_ready((out, kl))

        out_ref, kl_ref = _reference(p_params, q_params, eps, wp, bp, wq, bq, wo, bo, c_vars)
        assert out.shape == (B, c_out, L) and kl.shape == (B, c_vars, L)
        assert jnp.allclose(out, out_ref, rtol=1e-4, atol=1e-4)
        assert jnp.allclose(kl, kl_ref, rtol=1e-4, atol=1e-4)

    key = jax.random.PRNGKey(0)
    k1, k2 = jax.random.split(key)

    # module config: c_in=8, c_vars=8, c_out=8, kernel=3, transform_p_params=True
    # Case 1: B*L = 128 lanes -> one full-extent lane block (tiny-problem fallback).
    run_case(k1, B=8, c_in=8, c_vars=8, c_out=8, L=16)
    # Case 2: B*L = 2048 lanes -> 4 grid steps of 512 lanes: pipelined DMA/compute
    # overlap, and the "parallel" axis can shard across v7x's two TensorCores.
    run_case(k2, B=32, c_in=8, c_vars=8, c_out=8, L=64)

    print("KERNEL_OK")
</pallas_src>

<mosaic_0001>
module attributes {stable_mosaic.version = 11 : i64} {
  func.func @_nsb_kernel(%arg0: i32, %arg1: memref<8x128xf32, #tpu.memory_space<vmem>>, %arg2: memref<8x128xf32, #tpu.memory_space<vmem>>, %arg3: memref<8x128xf32, #tpu.memory_space<vmem>>, %arg4: memref<32x49xf32, #tpu.memory_space<vmem>>, %arg5: memref<8x25xf32, #tpu.memory_space<vmem>>, %arg6: memref<8x128xf32, #tpu.memory_space<vmem>>, %arg7: memref<8x128xf32, #tpu.memory_space<vmem>>) attributes {dimension_semantics = [#tpu.dimension_semantics<parallel>], iteration_bounds = array<i64: 1>, scalar_prefetch = 0 : i64, scratch_operands = 0 : i64, tpu.core_type = #tpu.core_type<tc>, window_params = [{transform_indices = @transform_0, window_bounds = array<i64: 8, 128>}, {transform_indices = @transform_1, window_bounds = array<i64: 8, 128>}, {transform_indices = @transform_2, window_bounds = array<i64: 8, 128>}, {pipeline_mode = #tpu.pipeline_mode<synchronous>, transform_indices = @transform_3, window_bounds = array<i64: 32, 49>}, {pipeline_mode = #tpu.pipeline_mode<synchronous>, transform_indices = @transform_4, window_bounds = array<i64: 8, 25>}, {transform_indices = @transform_5, window_bounds = array<i64: 8, 128>}, {transform_indices = @transform_6, window_bounds = array<i64: 8, 128>}]} {
    %0 = tpu.iota {dimensions = array<i32: 1>} : vector<1x128xi32>
    %c16_i32 = arith.constant 16 : i32
    %c0_i32 = arith.constant 0 : i32
    %1 = arith.cmpi eq, %c16_i32, %c0_i32 : i32
    %c1_i32 = arith.constant 1 : i32
    %2 = arith.select %1, %c1_i32, %c16_i32 : i32
    %3 = vector.broadcast %2 : i32 to vector<1x128xi32>
    %4 = arith.remsi %0, %3 : vector<1x128xi32>
    %c0_i32_0 = arith.constant 0 : i32
    %5 = vector.broadcast %c0_i32_0 : i32 to vector<1x128xi32>
    %6 = arith.cmpi ne, %4, %5 : vector<1x128xi32>
    %c0_i32_1 = arith.constant 0 : i32
    %7 = vector.broadcast %c0_i32_1 : i32 to vector<1x128xi32>
    %8 = arith.cmpi slt, %4, %7 : vector<1x128xi32>
    %c0_i32_2 = arith.constant 0 : i32
    %9 = arith.cmpi slt, %2, %c0_i32_2 : i32
    %10 = vector.broadcast %9 : i1 to vector<1x128xi1>
    %11 = vector.broadcast %10 : vector<1x128xi1> to vector<1x128xi1>
    %12 = arith.xori %8, %11 : vector<1x128xi1>
    %13 = arith.andi %12, %6 : vector<1x128xi1>
    %14 = vector.broadcast %2 : i32 to vector<1x128xi32>
    %15 = arith.addi %4, %14 : vector<1x128xi32>
    %16 = arith.select %13, %15, %4 : vector<1x128xi1>, vector<1x128xi32>
    %c0_i32_3 = arith.constant 0 : i32
    %17 = vector.broadcast %c0_i32_3 : i32 to vector<1x128xi32>
    %18 = arith.cmpi eq, %16, %17 : vector<1x128xi32>
    %c15_i32 = arith.constant 15 : i32
    %19 = vector.broadcast %c15_i32 : i32 to vector<1x128xi32>
    %20 = arith.cmpi eq, %16, %19 : vector<1x128xi32>
    %c0 = arith.constant 0 : index
    %c0_4 = arith.constant 0 : index
    %21 = vector.load %arg1[%c0, %c0_4] : memref<8x128xf32, #tpu.memory_space<vmem>>, vector<8x128xf32>
    %c0_5 = arith.constant 0 : index
    %c0_6 = arith.constant 0 : index
    %22 = vector.load %arg2[%c0_5, %c0_6] : memref<8x128xf32, #tpu.memory_space<vmem>>, vector<8x128xf32>
    %23 = vector.extract_strided_slice %21 {offsets = [0, 0], sizes = [8, 1], strides = [1, 1]} : vector<8x128xf32> to vector<8x1xf32>
    %24 = vector.extract_strided_slice %21 {offsets = [0, 0], sizes = [8, 127], strides = [1, 1]} : vector<8x128xf32> to vector<8x127xf32>
    %25 = tpu.concatenate %23, %24 in 1 : vector<8x1xf32>, vector<8x127xf32> -> vector<8x128xf32>
    %26 = vector.extract_strided_slice %21 {offsets = [0, 1], sizes = [8, 127], strides = [1, 1]} : vector<8x128xf32> to vector<8x127xf32>
    %27 = vector.extract_strided_slice %21 {offsets = [0, 127], sizes = [8, 1], strides = [1, 1]} : vector<8x128xf32> to vector<8x1xf32>
    %28 = tpu.concatenate %26, %27 in 1 : vector<8x127xf32>, vector<8x1xf32> -> vector<8x128xf32>
    %29 = vector.shape_cast %18 : vector<1x128xi1> to vector<1x128xi1>
    %30 = vector.broadcast %29 : vector<1x128xi1> to vector<8x128xi1>
    %31 = arith.select %30, %21, %25 : vector<8x128xi1>, vector<8x128xf32>
    %32 = vector.shape_cast %20 : vector<1x128xi1> to vector<1x128xi1>
    %33 = vector.broadcast %32 : vector<1x128xi1> to vector<8x128xi1>
    %34 = arith.select %33, %21, %28 : vector<8x128xi1>, vector<8x128xf32>
    %35 = vector.extract_strided_slice %22 {offsets = [0, 0], sizes = [8, 1], strides = [1, 1]} : vector<8x128xf32> to vector<8x1xf32>
    %36 = vector.extract_strided_slice %22 {offsets = [0, 0], sizes = [8, 127], strides = [1, 1]} : vector<8x128xf32> to vector<8x127xf32>
    %37 = tpu.concatenate %35, %36 in 1 : vector<8x1xf32>, vector<8x127xf32> -> vector<8x128xf32>
    %38 = vector.extract_strided_slice %22 {offsets = [0, 1], sizes = [8, 127], strides = [1, 1]} : vector<8x128xf32> to vector<8x127xf32>
    %39 = vector.extract_strided_slice %22 {offsets = [0, 127], sizes = [8, 1], strides = [1, 1]} : vector<8x128xf32> to vector<8x1xf32>
    %40 = tpu.concatenate %38, %39 in 1 : vector<8x127xf32>, vector<8x1xf32> -> vector<8x128xf32>
    %41 = vector.shape_cast %18 : vector<1x128xi1> to vector<1x128xi1>
    %42 = vector.broadcast %41 : vector<1x128xi1> to vector<8x128xi1>
    %43 = arith.select %42, %22, %37 : vector<8x128xi1>, vector<8x128xf32>
    %44 = vector.shape_cast %20 : vector<1x128xi1> to vector<1x128xi1>
    %45 = vector.broadcast %44 : vector<1x128xi1> to vector<8x128xi1>
    %46 = arith.select %45, %22, %40 : vector<8x128xi1>, vector<8x128xf32>
    %cst = arith.constant 1.000000e+00 : f32
    %47 = vector.broadcast %cst : f32 to vector<1x128xf32>
    %48 = tpu.concatenate %31, %21, %34, %43, %22, %46, %47 in 0 : vector<8x128xf32>, vector<8x128xf32>, vector<8x128xf32>, vector<8x128xf32>, vector<8x128xf32>, vector<8x128xf32>, vector<1x128xf32> -> vector<49x128xf32>
    %c0_7 = arith.constant 0 : index
    %c0_8 = arith.constant 0 : index
    %49 = vector.load %arg4[%c0_7, %c0_8] : memref<32x49xf32, #tpu.memory_space<vmem>>, vector<32x49xf32>
    %cst_9 = arith.constant dense<0.000000e+00> : vector<32x128xf32>
    %50 = tpu.matmul %49, %48, %cst_9 {dimension_numbers = #tpu.dot_dimension_numbers<[1], [0], [0], [1], [0, 0, 1, 1], [], []>} : vector<32x49xf32>, vector<49x128xf32>, vector<32x128xf32> -> vector<32x128xf32>
    %51 = vector.extract_strided_slice %50 {offsets = [0, 0], sizes = [8, 128], strides = [1, 1]} : vector<32x128xf32> to vector<8x128xf32>
    %52 = vector.extract_strided_slice %50 {offsets = [8, 0], sizes = [8, 128], strides = [1, 1]} : vector<32x128xf32> to vector<8x128xf32>
    %53 = vector.extract_strided_slice %50 {offsets = [16, 0], sizes = [8, 128], strides = [1, 1]} : vector<32x128xf32> to vector<8x128xf32>
    %54 = vector.extract_strided_slice %50 {offsets = [24, 0], sizes = [8, 128], strides = [1, 1]} : vector<32x128xf32> to vector<8x128xf32>
    %cst_10 = arith.constant 0.000000e+00 : f32
    %55 = vector.broadcast %cst_10 : f32 to vector<8x128xf32>
    %56 = arith.maximumf %52, %55 : vector<8x128xf32>
    %57 = math.absf %52 : vector<8x128xf32>
    %cst_11 = arith.constant 0.000000e+00 : f32
    %58 = vector.broadcast %cst_11 : f32 to vector<8x128xf32>
    %59 = arith.subf %58, %57 : vector<8x128xf32>
    %60 = math.exp %59 : vector<8x128xf32>
    %cst_12 = arith.constant 1.000000e+00 : f32
    %61 = vector.broadcast %cst_12 : f32 to vector<8x128xf32>
    %62 = arith.addf %61, %60 : vector<8x128xf32>
    %63 = math.log %62 : vector<8x128xf32>
    %64 = arith.addf %56, %63 : vector<8x128xf32>
    %cst_13 = arith.constant 0.000000e+00 : f32
    %65 = vector.broadcast %cst_13 : f32 to vector<8x128xf32>
    %66 = arith.maximumf %54, %65 : vector<8x128xf32>
    %67 = math.absf %54 : vector<8x128xf32>
    %cst_14 = arith.constant 0.000000e+00 : f32
    %68 = vector.broadcast %cst_14 : f32 to vector<8x128xf32>
    %69 = arith.subf %68, %67 : vector<8x128xf32>
    %70 = math.exp %69 : vector<8x128xf32>
    %cst_15 = arith.constant 1.000000e+00 : f32
    %71 = vector.broadcast %cst_15 : f32 to vector<8x128xf32>
    %72 = arith.addf %71, %70 : vector<8x128xf32>
    %73 = math.log %72 : vector<8x128xf32>
    %74 = arith.addf %66, %73 : vector<8x128xf32>
    %c0_16 = arith.constant 0 : index
    %c0_17 = arith.constant 0 : index
    %75 = vector.load %arg3[%c0_16, %c0_17] : memref<8x128xf32, #tpu.memory_space<vmem>>, vector<8x128xf32>
    %76 = arith.mulf %74, %75 : vector<8x128xf32>
    %77 = arith.addf %53, %76 : vector<8x128xf32>
    %78 = vector.extract_strided_slice %77 {offsets = [0, 0], sizes = [8, 1], strides = [1, 1]} : vector<8x128xf32> to vector<8x1xf32>
    %79 = vector.extract_strided_slice %77 {offsets = [0, 0], sizes = [8, 127], strides = [1, 1]} : vector<8x128xf32> to vector<8x127xf32>
    %80 = tpu.concatenate %78, %79 in 1 : vector<8x1xf32>, vector<8x127xf32> -> vector<8x128xf32>
    %81 = vector.extract_strided_slice %77 {offsets = [0, 1], sizes = [8, 127], strides = [1, 1]} : vector<8x128xf32> to vector<8x127xf32>
    %82 = vector.extract_strided_slice %77 {offsets = [0, 127], sizes = [8, 1], strides = [1, 1]} : vector<8x128xf32> to vector<8x1xf32>
    %83 = tpu.concatenate %81, %82 in 1 : vector<8x127xf32>, vector<8x1xf32> -> vector<8x128xf32>
    %84 = vector.shape_cast %18 : vector<1x128xi1> to vector<1x128xi1>
    %85 = vector.broadcast %84 : vector<1x128xi1> to vector<8x128xi1>
    %86 = arith.select %85, %77, %80 : vector<8x128xi1>, vector<8x128xf32>
    %87 = vector.shape_cast %20 : vector<1x128xi1> to vector<1x128xi1>
    %88 = vector.broadcast %87 : vector<1x128xi1> to vector<8x128xi1>
    %89 = arith.select %88, %77, %83 : vector<8x128xi1>, vector<8x128xf32>
    %90 = tpu.concatenate %86, %77, %89, %47 in 0 : vector<8x128xf32>, vector<8x128xf32>, vector<8x128xf32>, vector<1x128xf32> -> vector<25x128xf32>
    %c0_18 = arith.constant 0 : index
    %c0_19 = arith.constant 0 : index
    %91 = vector.load %arg5[%c0_18, %c0_19] : memref<8x25xf32, #tpu.memory_space<vmem>>, vector<8x25xf32>
    %cst_20 = arith.constant dense<0.000000e+00> : vector<8x128xf32>
    %92 = tpu.matmul %91, %90, %cst_20 {dimension_numbers = #tpu.dot_dimension_numbers<[1], [0], [0], [1], [0, 0, 1, 1], [], []>} : vector<8x25xf32>, vector<25x128xf32>, vector<8x128xf32> -> vector<8x128xf32>
    %c0_21 = arith.constant 0 : index
    %c0_22 = arith.constant 0 : index
    %93 = vector.load %arg6[%c0_21, %c0_22] : memref<8x128xf32, #tpu.memory_space<vmem>>, vector<8x128xf32>
    tpu.vector_store %arg6[%c0_21, %c0_22], %92 {strides = array<i32>} : memref<8x128xf32, #tpu.memory_space<vmem>>, vector<8x128xf32>,
    %cst_23 = arith.constant 1.000000e+00 : f32
    %94 = vector.broadcast %cst_23 : f32 to vector<8x128xf32>
    %95 = arith.divf %94, %64 : vector<8x128xf32>
    %96 = arith.mulf %74, %95 : vector<8x128xf32>
    %97 = arith.mulf %96, %96 : vector<8x128xf32>
    %98 = arith.subf %53, %51 : vector<8x128xf32>
    %99 = arith.mulf %98, %95 : vector<8x128xf32>
    %100 = arith.mulf %99, %99 : vector<8x128xf32>
    %101 = arith.addf %97, %100 : vector<8x128xf32>
    %cst_24 = arith.constant 1.000000e+00 : f32
    %102 = vector.broadcast %cst_24 : f32 to vector<8x128xf32>
    %103 = arith.subf %101, %102 : vector<8x128xf32>
    %104 = math.log %97 : vector<8x128xf32>
    %105 = arith.subf %103, %104 : vector<8x128xf32>
    %cst_25 = arith.constant 5.000000e-01 : f32
    %106 = vector.broadcast %cst_25 : f32 to vector<8x128xf32>
    %107 = arith.mulf %106, %105 : vector<8x128xf32>
    %c0_26 = arith.constant 0 : index
    %c0_27 = arith.constant 0 : index
    %108 = vector.load %arg7[%c0_26, %c0_27] : memref<8x128xf32, #tpu.memory_space<vmem>>, vector<8x128xf32>
    tpu.vector_store %arg7[%c0_26, %c0_27], %107 {strides = array<i32>} : memref<8x128xf32, #tpu.memory_space<vmem>>, vector<8x128xf32>,
    return
  }
  func.func @transform_0(%arg0: i32) -> (i32, i32) {
    %c0_i32 = arith.constant 0 : i32
    %c0_i32_0 = arith.constant 0 : i32
    return %c0_i32, %arg0 : i32, i32
  }
  func.func @transform_1(%arg0: i32) -> (i32, i32) {
    %c0_i32 = arith.constant 0 : i32
    %c0_i32_0 = arith.constant 0 : i32
    return %c0_i32, %arg0 : i32, i32
  }
  func.func @transform_2(%arg0: i32) -> (i32, i32) {
    %c0_i32 = arith.constant 0 : i32
    %c0_i32_0 = arith.constant 0 : i32
    return %c0_i32, %arg0 : i32, i32
  }
  func.func @transform_3(%arg0: i32) -> (i32, i32) {
    %c0_i32 = arith.constant 0 : i32
    %c0_i32_0 = arith.constant 0 : i32
    %c0_i32_1 = arith.constant 0 : i32
    return %c0_i32, %c0_i32_0 : i32, i32
  }
  func.func @transform_4(%arg0: i32) -> (i32, i32) {
    %c0_i32 = arith.constant 0 : i32
    %c0_i32_0 = arith.constant 0 : i32
    %c0_i32_1 = arith.constant 0 : i32
    return %c0_i32, %c0_i32_0 : i32, i32
  }
  func.func @transform_5(%arg0: i32) -> (i32, i32) {
    %c0_i32 = arith.constant 0 : i32
    %c0_i32_0 = arith.constant 0 : i32
    return %c0_i32, %arg0 : i32, i32
  }
  func.func @transform_6(%arg0: i32) -> (i32, i32) {
    %c0_i32 = arith.constant 0 : i32
    %c0_i32_0 = arith.constant 0 : i32
    return %c0_i32, %arg0 : i32, i32
  }
}

</mosaic_0001>

<llo_original>
// kernel: tpu_custom_call.1
$region0: #{tpu_custom_call.1}
  #allocation0 [shape = 'u32[]', space=smem, size = 0x4, offset = 0x4, fixed_abs, tag = 'smem constant byte address 0x4 - core index']
  #allocation1 [shape = 'u32[72,128]{1,0:T(1,128)}', space=vmem, size = 0x9000, scoped, tag = 'internal scratch']
  %s0 = inlined_call_operand.hbm [shape: f32[8,128], index: 0, kind: input, shape index: {}]
  %s1 = inlined_call_operand.hbm [shape: f32[8,128], index: 1, kind: input, shape index: {}]
  %s2 = inlined_call_operand.hbm [shape: f32[8,128], index: 2, kind: input, shape index: {}]
  %s3 = inlined_call_operand.hbm [shape: f32[32,49], index: 3, kind: input, shape index: {}]
  %s4 = inlined_call_operand.hbm [shape: f32[8,25], index: 4, kind: input, shape index: {}]
  %s5 = inlined_call_operand.hbm [shape: f32[8,128], index: 5, kind: output, shape index: {0}]
  %s6 = inlined_call_operand.hbm [shape: f32[8,128], index: 6, kind: output, shape index: {1}]
  %7 = xla_tuple %s5, %s6
  %s8 = sld [smem:[#allocation0]]
  $region58: #{tpu_custom_call.1} parent=0
    _
  %s10 = ssub.s32 1, %s8
  %s11 = scalar_select 0, %s10, %s8
  $region1: #{tpu_custom_call.1} parent=0
    #allocation2 [shape = 'u8[4096]{0}', space=vmem, size = 0x1000, scoped, tag = 'input window, operand 0, single buffered']
    #allocation3 [shape = 's32[1]{0}', space=sflag, size = 0x4, scoped, tag = 'scoped memory for tpu_custom_call.1']
    #allocation4 [shape = 's32[1]{0}', space=sflag, size = 0x4, scoped, tag = 'scoped memory for tpu_custom_call.1']
    #allocation5 [shape = 'u8[4096]{0}', space=vmem, size = 0x1000, scoped, tag = 'input window, operand 1, single buffered']
    #allocation6 [shape = 's32[1]{0}', space=sflag, size = 0x4, scoped, tag = 'scoped memory for tpu_custom_call.1']
    #allocation7 [shape = 'u8[4096]{0}', space=vmem, size = 0x1000, scoped, tag = 'input window, operand 2, single buffered']
    #allocation8 [shape = 'u8[16384]{0}', space=vmem, size = 0x4000, scoped, tag = 'input window, operand 3, single buffered']
    #allocation9 [shape = 's32[1]{0}', space=sflag, size = 0x4, scoped, tag = 'scoped memory for tpu_custom_call.1']
    #allocation10 [shape = 'u8[4096]{0}', space=vmem, size = 0x1000, scoped, tag = 'input window, operand 4, single buffered']
    #allocation11 [shape = 'u8[4096]{0}', space=vmem, size = 0x1000, scoped, tag = 'output window, operand 0, single buffered']
    #allocation12 [shape = 'u8[4096]{0}', space=vmem, size = 0x1000, scoped, tag = 'output window, operand 1, single buffered']
    #allocation13 [shape = 's32[1]{0}', space=sflag, size = 0x4, scoped, tag = 'scoped memory for tpu_custom_call.1']
    %12 = vsyncpa [#allocation3], 0
    %13 = vsyncpa [#allocation6], 0
    %14 = vsyncpa [#allocation9], 0
    %15 = vsyncpa [#allocation4], 0
    %16 = vsyncpa [#allocation13], 0
    // Predicated region
    $region2: #{tpu_custom_call.1} parent=1 // pred_check
      _
    $region3: #{tpu_custom_call.1} parent=1 // pred_check_branch
      %18 = sbr.rel (0) target = $region5
    $region4: #{tpu_custom_call.1} parent=1 // pred_region
      %20 = vsyncadd [#allocation3], 0
      %s22 = sshll.u32 %s0, 4
      %s23 = int_to_ptr.hbm [resolvable:$true] %s22
      %s24 = sshll.u32 [#allocation2], 4
      %s25 = int_to_ptr.vmem [resolvable:$true] %s24
      %27 = dma.hbm_to_vmem [thread:$0]  %s23, 128, %s25, [#allocation3]
    $region5: #{tpu_custom_call.1} parent=1 // pred_fallthru
      _
    // Predicated region
    $region6: #{tpu_custom_call.1} parent=1 // pred_check
      _
    $region7: #{tpu_custom_call.1} parent=1 // pred_check_branch
      %29 = sbr.rel (0) target = $region9
    $region8: #{tpu_custom_call.1} parent=1 // pred_region
      %31 = vsyncadd [#allocation6], 0
      %s33 = sshll.u32 %s1, 4
      %s34 = int_to_ptr.hbm [resolvable:$true] %s33
      %s35 = sshll.u32 [#allocation5], 4
      %s36 = int_to_ptr.vmem [resolvable:$true] %s35
      %38 = dma.hbm_to_vmem [thread:$0]  %s34, 128, %s36, [#allocation6]
    $region9: #{tpu_custom_call.1} parent=1 // pred_fallthru
      _
    // Predicated region
    $region10: #{tpu_custom_call.1} parent=1 // pred_check
      _
    $region11: #{tpu_custom_call.1} parent=1 // pred_check_branch
      %40 = sbr.rel (0) target = $region13
    $region12: #{tpu_custom_call.1} parent=1 // pred_region
      %42 = vsyncadd [#allocation6], 0
      %s44 = sshll.u32 %s2, 4
      %s45 = int_to_ptr.hbm [resolvable:$true] %s44
      %s46 = sshll.u32 [#allocation7], 4
      %s47 = int_to_ptr.vmem [resolvable:$true] %s46
      %49 = dma.hbm_to_vmem [thread:$0]  %s45, 128, %s47, [#allocation6]
    $region13: #{tpu_custom_call.1} parent=1 // pred_fallthru
      _
    // Predicated region
    $region14: #{tpu_custom_call.1} parent=1 // pred_check
      _
    $region15: #{tpu_custom_call.1} parent=1 // pred_check_branch
      %51 = sbr.rel (0) target = $region17
    $region16: #{tpu_custom_call.1} parent=1 // pred_region
      %53 = vsyncadd [#allocation9], 0
      %s54 = sshll.u32 %s3, 4
      %s55 = int_to_ptr.hbm [resolvable:$true] %s54
      %s56 = sshll.u32 [#allocation8], 4
      %s57 = int_to_ptr.vmem [resolvable:$true] %s56
      %62 = dma.hbm_to_vmem [thread:$0]  %s55, 512, %s57, [#allocation9], 128, 128, 8
    $region17: #{tpu_custom_call.1} parent=1 // pred_fallthru
      _
    // Predicated region
    $region18: #{tpu_custom_call.1} parent=1 // pred_check
      _
    $region19: #{tpu_custom_call.1} parent=1 // pred_check_branch
      %64 = sbr.rel (0) target = $region21
    $region20: #{tpu_custom_call.1} parent=1 // pred_region
      %66 = vsyncadd [#allocation9], 0
      %s68 = sshll.u32 %s4, 4
      %s69 = int_to_ptr.hbm [resolvable:$true] %s68
      %s70 = sshll.u32 [#allocation10], 4
      %s71 = int_to_ptr.vmem [resolvable:$true] %s70
      %73 = dma.hbm_to_vmem [thread:$0]  %s69, 128, %s71, [#allocation9]
    $region21: #{tpu_custom_call.1} parent=1 // pred_fallthru
      _
    // Predicated region
    $region22: #{tpu_custom_call.1} parent=1 // pred_check
      _
    $region23: #{tpu_custom_call.1} parent=1 // pred_check_branch
      %75 = sbr.rel (0) target = $region25
    $region24: #{tpu_custom_call.1} parent=1 // pred_region
      %77 = dma.done [#allocation3], 128
    $region25: #{tpu_custom_call.1} parent=1 // pred_fallthru
      _
    // Predicated region
    $region26: #{tpu_custom_call.1} parent=1 // pred_check
      _
    $region27: #{tpu_custom_call.1} parent=1 // pred_check_branch
      %79 = sbr.rel (0) target = $region29
    $region28: #{tpu_custom_call.1} parent=1 // pred_region
      %81 = dma.done [#allocation6], 128
    $region29: #{tpu_custom_call.1} parent=1 // pred_fallthru
      _
    // Predicated region
    $region30: #{tpu_custom_call.1} parent=1 // pred_check
      _
    $region31: #{tpu_custom_call.1} parent=1 // pred_check_branch
      %83 = sbr.rel (0) target = $region33
    $region32: #{tpu_custom_call.1} parent=1 // pred_region
      %85 = dma.done [#allocation6], 128
    $region33: #{tpu_custom_call.1} parent=1 // pred_fallthru
      _
    // Predicated region
    $region34: #{tpu_custom_call.1} parent=1 // pred_check
      _
    $region35: #{tpu_custom_call.1} parent=1 // pred_check_branch
      %87 = sbr.rel (0) target = $region37
    $region36: #{tpu_custom_call.1} parent=1 // pred_region
      %89 = dma.done [#allocation9], 512
    $region37: #{tpu_custom_call.1} parent=1 // pred_fallthru
      _
    // Predicated region
    $region38: #{tpu_custom_call.1} parent=1 // pred_check
      _
    $region39: #{tpu_custom_call.1} parent=1 // pred_check_branch
      %91 = sbr.rel (0) target = $region41
    $region40: #{tpu_custom_call.1} parent=1 // pred_region
      %93 = dma.done [#allocation9], 128
    $region41: #{tpu_custom_call.1} parent=1 // pred_fallthru
      _
    %v94 = vlaneseq
    %v95 = vand.u32 %v94, 127
    %vm96 = vcmp.lt.s32.totalorder %v95, 0
    %v97 = vsub.s32 0, %v95
    %v98 = vsel %vm96, %v97, %v95
    %v99 = vshrl.u32 %v98, 4
    %v100 = vand.u32 %v98, 15
    %v101 = vsub.s32 0, %v100
    %v102 = vsel %vm96, %v101, %v100
    %vm103 = vcmp.ne.s32.totalorder %v102, 0
    %vm104 = vcmp.lt.s32.totalorder %v102, 0
    %vm105 = vmand %vm104, %vm103
    %v106 = vadd.s32 %v102, 16
    %v107 = vsel %vm105, %v106, %v102
    %vm108 = vcmp.eq.s32.totalorder %v107, 0
    %vm109 = vcmp.eq.s32.totalorder %v107, 15
    %v110 = vld [vmem:[#allocation2] sm:$0xff]
    %v111 = vld [vmem:[#allocation5] sm:$0xff]
    %113 = vrot.lane.b32.xlu0 %v110, 1
    %v114 = vpop.permute.xlu0 %113
    %vm116 = vcmask 7168
    %v117 = vsel %vm116, %v110, %v114
    %118 = vrot.lane.b32.xlu0 %v110, 127
    %v119 = vpop.permute.xlu0 %118
    %vm121 = vcmask 1039360
    %v122 = vsel %vm121, %v119, %v110
    %v123 = vsel %vm108, 1, 0
    %vm124 = vcmp.eq.s32.totalorder %v123, 1
    %v125 = vsel %vm124, %v110, %v117
    %v126 = vsel %vm109, 1, 0
    %vm127 = vcmp.eq.s32.totalorder %v126, 1
    %v128 = vsel %vm127, %v110, %v122
    %130 = vrot.lane.b32.xlu0 %v111, 1
    %v131 = vpop.permute.xlu0 %130
    %v133 = vsel %vm116, %v111, %v131
    %134 = vrot.lane.b32.xlu0 %v111, 127
    %v135 = vpop.permute.xlu0 %134
    %v137 = vsel %vm121, %v135, %v111
    %v138 = vsel %vm124, %v111, %v133
    %v139 = vsel %vm127, %v111, %v137
    %v140 = vld [vmem:[#allocation8] sm:$0xff]
    %v141 = vld [vmem:[#allocation8 + $0x8] sm:$0xff]
    %v142 = vld [vmem:[#allocation8 + $0x10] sm:$0xff]
    %v143 = vld [vmem:[#allocation8 + $0x18] sm:$0xff]
    %vm144 = vcmask 400384
    %v146 = vsel %vm144, %v140, 0
    %v149 = vsel %vm144, %v141, 0
    %v152 = vsel %vm144, %v142, 0
    %v155 = vsel %vm144, %v143, 0
    %vm157 = vcmask 1040384
    %v159 = vsel %vm157, 1.0, 0
    %161 = vmatpush.msra.mxu0 0.0
    %162 = vmatpush.msra.mxu0 0.0
    %163 = vmatpush.msra.mxu0 0.0
    %164 = vmatpush.msra.mxu0 0.0
    %165 = vmatpush.msra.mxu0 0.0
    %166 = vmatpush.msra.mxu0 0.0
    %167 = vmatpush.msra.mxu0 0.0
    %168 = vmatpush.msra.mxu0 0.0
    %169 = vmatpush.msra.mxu0 0.0
    %170 = vmatpush.msra.mxu0 %v159
    %171 = vmatpush.msra.mxu0 %v139
    %172 = vmatpush.msra.mxu0 %v111
    %173 = vmatpush.msra.mxu0 %v138
    %174 = vmatpush.msra.mxu0 %v128
    %175 = vmatpush.msra.mxu0 %v110
    %176 = vmatpush.msra.mxu0 %v125
    %177 = vmatmul.f32.gmra.mxu0 %v146
    %v178 = vpop.f32.mrf.mxu0
    %v179 = vadd.f32 0.0, %v178
    %180 = vmatmul.f32.gmra.mxu0 %v149
    %v181 = vpop.f32.mrf.mxu0
    %v182 = vadd.f32 0.0, %v181
    %183 = vmatmul.f32.gmra.mxu0 %v152
    %v184 = vpop.f32.mrf.mxu0
    %v185 = vadd.f32 0.0, %v184
    %186 = vmatmul.f32.gmra.mxu0 %v155
    %v187 = vpop.f32.mrf.mxu0
    %v188 = vadd.f32 0.0, %v187
    %189 = vdwg.mxu0
    %v190 = vmax.f32 %v182, 0.0
    %v191 = vand.u32 2147483647, %v182
    %v192 = vsub.f32 0.0, %v191
    %v193 = vmul.f32 %v192, 1.442695
    %v194 = vpow.pop %v193
    %v195 = vadd.f32 %v194, 1.0
    %v196 = vlog2.pop %v195
    %v197 = vmul.f32 %v196, 0.6931472
    %v198 = vadd.f32 %v190, %v197
    %v199 = vmax.f32 %v188, 0.0
    %v200 = vand.u32 2147483647, %v188
    %v201 = vsub.f32 0.0, %v200
    %v202 = vmul.f32 %v201, 1.442695
    %v203 = vpow.pop %v202
    %v204 = vadd.f32 %v203, 1.0
    %v205 = vlog2.pop %v204
    %v206 = vmul.f32 %v205, 0.6931472
    %v207 = vadd.f32 %v199, %v206
    %v208 = vld [vmem:[#allocation7] sm:$0xff]
    %v209 = vmul.f32 %v207, %v208
    %v210 = vadd.f32 %v185, %v209
    %212 = vrot.lane.b32.xlu0 %v210, 1
    %v213 = vpop.permute.xlu0 %212
    %v215 = vsel %vm116, %v210, %v213
    %216 = vrot.lane.b32.xlu0 %v210, 127
    %v217 = vpop.permute.xlu0 %216
    %v219 = vsel %vm121, %v217, %v210
    %v220 = vsel %vm124, %v210, %v215
    %v221 = vsel %vm127, %v210, %v219
    %v222 = vld [vmem:[#allocation10] sm:$0xff]
    %vm223 = vcmask 203776
    %v225 = vsel %vm223, %v222, 0
    %227 = vmatpush.msra.mxu0 0.0
    %228 = vmatpush.msra.mxu0 0.0
    %229 = vmatpush.msra.mxu0 0.0
    %230 = vmatpush.msra.mxu0 0.0
    %231 = vmatpush.msra.mxu0 0.0
    %232 = vmatpush.msra.mxu0 0.0
    %233 = vmatpush.msra.mxu0 0.0
    %234 = vmatpush.msra.mxu0 0.0
    %235 = vmatpush.msra.mxu0 0.0
    %236 = vmatpush.msra.mxu0 0.0
    %237 = vmatpush.msra.mxu0 0.0
    %238 = vmatpush.msra.mxu0 0.0
    %239 = vmatpush.msra.mxu0 %v159
    %240 = vmatpush.msra.mxu0 %v221
    %241 = vmatpush.msra.mxu0 %v210
    %242 = vmatpush.msra.mxu0 %v220
    %243 = vmatmul.f32.gmra.mxu0 %v225
    %v244 = vpop.f32.mrf.mxu0
    %v245 = vadd.f32 0.0, %v244
    %246 = vdwg.mxu0
    %247 = vst [vmem:[#allocation11] sm:$0xff] %v245
    %v248 = vrcp.pop %v198
    %v249 = vmul.f32 %v198, %v248
    %v250 = vsub.f32 1.0, %v249
    %v251 = vmul.f32 %v248, %v250
    %v252 = vadd.f32 %v248, %v251
    %vm253 = vweird.f32 %v198
    %vm254 = vweird.f32 %v248
    %vm255 = vmor %vm253, %vm254
    %v256 = vsel %vm255, %v248, %v252
    %v257 = vand.u32 2147483647, %v198
    %vm258 = vcmp.eq.f32.partialorder %v257, 8.507059e+37
    %v259 = vand.u32 %v198, 2147483648
    %v260 = vor.u32 1.1754944e-38, %v259
    %v261 = vsel %vm258, %v260, %v256
    %v262 = vmul.f32 1.0, %v261
    %v263 = vmul.f32 %v207, %v262
    %v264 = vmul.f32 %v263, %v263
    %v265 = vsub.f32 %v185, %v179
    %v266 = vmul.f32 %v265, %v262
    %v267 = vmul.f32 %v266, %v266
    %v268 = vadd.f32 %v264, %v267
    %v269 = vsub.f32 %v268, 1.0
    %v270 = vlog2.pop %v264
    %v271 = vmul.f32 %v270, 0.6931472
    %v272 = vsub.f32 %v269, %v271
    %v273 = vmul.f32 %v272, 0.5
    %274 = vst [vmem:[#allocation12] sm:$0xff] %v273
    // Predicated region
    $region42: #{tpu_custom_call.1} parent=1 // pred_check
      _
    $region43: #{tpu_custom_call.1} parent=1 // pred_check_branch
      %276 = sbr.rel (0) target = $region45
    $region44: #{tpu_custom_call.1} parent=1 // pred_region
      %278 = vsyncadd [#allocation4], 0
      %s280 = sshll.u32 [#allocation11], 4
      %s281 = int_to_ptr.vmem [resolvable:$true] %s280
      %s282 = sshll.u32 %s5, 4
      %s283 = int_to_ptr.hbm [resolvable:$true] %s282
      %285 = dma.vmem_to_hbm [thread:$0]  %s281, 128, %s283, [#allocation4]
    $region45: #{tpu_custom_call.1} parent=1 // pred_fallthru
      _
    // Predicated region
    $region46: #{tpu_custom_call.1} parent=1 // pred_check
      _
    $region47: #{tpu_custom_call.1} parent=1 // pred_check_branch
      %287 = sbr.rel (0) target = $region49
    $region48: #{tpu_custom_call.1} parent=1 // pred_region
      %289 = vsyncadd [#allocation13], 0
      %s291 = sshll.u32 [#allocation12], 4
      %s292 = int_to_ptr.vmem [resolvable:$true] %s291
      %s293 = sshll.u32 %s6, 4
      %s294 = int_to_ptr.hbm [resolvable:$true] %s293
      %296 = dma.vmem_to_hbm [thread:$0]  %s292, 128, %s294, [#allocation13]
    $region49: #{tpu_custom_call.1} parent=1 // pred_fallthru
      _
    // Predicated region
    $region50: #{tpu_custom_call.1} parent=1 // pred_check
      _
    $region51: #{tpu_custom_call.1} parent=1 // pred_check_branch
      %298 = sbr.rel (0) target = $region53
    $region52: #{tpu_custom_call.1} parent=1 // pred_region
      %300 = dma.done [#allocation4], 128
    $region53: #{tpu_custom_call.1} parent=1 // pred_fallthru
      _
    // Predicated region
    $region54: #{tpu_custom_call.1} parent=1 // pred_check
      _
    $region55: #{tpu_custom_call.1} parent=1 // pred_check_branch
      %302 = sbr.rel (0) target = $region57
    $region56: #{tpu_custom_call.1} parent=1 // pred_region
      %304 = dma.done [#allocation13], 128
    $region57: #{tpu_custom_call.1} parent=1 // pred_fallthru
      _
    %305 = vsyncpa [#allocation3], 1
    %306 = vsyncpa [#allocation6], 1
    %307 = vsyncpa [#allocation9], 1
    %308 = vsyncpa [#allocation4], 1
    %309 = vsyncpa [#allocation13], 1

</llo_original>
